<compile_context>
chip_gen: v7x
topology: tpu7x:2x2x1
jax: 0.10.0
libtpu: 0.0.40
codegen_flags: <defaults>
</compile_context>

<pallas_src>
import functools
import math

import jax
import jax.numpy as jnp
from jax import lax
from jax.experimental import pallas as pl
from jax.experimental.pallas import tpu as pltpu

IN_FEATURES = 100
OUT_FEATURES = 2
DEFAULT_TILE_N = 8192  # rows per grid step; multiple of 128 (output lane dim)


def _linear_logsoftmax_kernel(x_ref, w_ref, b_ref, o_ref):
    x = x_ref[...]          # (TILE_N, 100) f32
    w = w_ref[...]          # (2, 100)      f32 (PyTorch layout, VMEM resident)

    # Only the logit difference matters for 2-class log-softmax:
    #   d = logit1 - logit0 = (w1 - w0) . x + (b1 - b0)
    w_diff = w[1:2, :] - w[0:1, :]                              # (1, 100)
    d = lax.dot_general(
        w_diff, x,
        dimension_numbers=(((1,), (1,)), ((), ())),
        preferred_element_type=jnp.float32,
    ) + (b_ref[1] - b_ref[0])                                   # (1, TILE_N), lane-dense

    # log_softmax: out0 = -softplus(d), out1 = d - softplus(d)
    # Stable softplus: max(d, 0) + log(1 + exp(-|d|))  (one exp + one log/lane).
    sp = jnp.maximum(d, 0.0) + jnp.log(1.0 + jnp.exp(-jnp.abs(d)))
    o_ref[0:1, :] = (-sp).astype(o_ref.dtype)
    o_ref[1:2, :] = (d - sp).astype(o_ref.dtype)


@functools.partial(jax.jit, static_argnames=("tile_n",))
def my_module_forward(x, weight, bias, *, tile_n=DEFAULT_TILE_N):
    """x: (N, 100) f32; weight: (2, 100) f32 (PyTorch layout); bias: (2,) f32.

    Returns log_softmax(x @ weight.T + bias, axis=-1) with shape (N, 2).
    """
    assert tile_n % 128 == 0, "tile_n must be a multiple of 128 (output lane dim)"
    n = x.shape[0]

    if n < 256:
        # Single block covering the whole (small) batch: block dims == array dims,
        # so no (8,128) alignment constraints apply.
        tile = n
    else:
        # 128-aligned tile; capped at ~n/2 so the grid always has >= 2 steps
        # (keeps both v7x TensorCores busy on mid-size batches). No padding of X:
        # the boundary block's out-of-range lanes are masked on store by Pallas.
        half = ((pl.cdiv(n, 2) + 127) // 128) * 128
        tile = min(tile_n, half)
    grid = (pl.cdiv(n, tile),)

    cost = pl.CostEstimate(
        flops=2 * OUT_FEATURES * IN_FEATURES * n,
        bytes_accessed=(n * IN_FEATURES * 4
                        + n * OUT_FEATURES * 4
                        + OUT_FEATURES * (IN_FEATURES + 1) * 4),
        transcendentals=2 * n,
    )

    out_t = pl.pallas_call(
        _linear_logsoftmax_kernel,
        out_shape=jax.ShapeDtypeStruct((OUT_FEATURES, n), jnp.float32),
        grid=grid,
        in_specs=[
            pl.BlockSpec((tile, IN_FEATURES), lambda i: (i, 0)),          # X tile, pipelined
            pl.BlockSpec((OUT_FEATURES, IN_FEATURES), lambda i: (0, 0)),  # W resident in VMEM
            pl.BlockSpec(memory_space=pltpu.MemorySpace.SMEM),            # bias scalars in SMEM
        ],
        out_specs=pl.BlockSpec((OUT_FEATURES, tile), lambda i: (0, i)),   # lane-dense store
        compiler_params=pltpu.CompilerParams(
            dimension_semantics=("parallel",),
            vmem_limit_bytes=32 * 1024 * 1024,  # allows 16k-row tiles even on v5e
        ),
        cost_estimate=cost,
    )(x, weight, bias)

    # (2, N) -> (N, 2); tiny (N*2 element) transpose outside the kernel.
    return out_t.T


def _reference(x, weight, bias):
    logits = jnp.dot(x, weight.T, precision=lax.Precision.HIGHEST) + bias
    return jax.nn.log_softmax(logits, axis=-1)


if __name__ == "__main__":
    key = jax.random.PRNGKey(0)
    kx1, kx2, kx3, kw, kb = jax.random.split(key, 5)

    # Deterministic init mimicking nn.Linear defaults: U(-1/sqrt(fan_in), ...).
    bound = 1.0 / math.sqrt(IN_FEATURES)
    weight = jax.random.uniform(
        kw, (OUT_FEATURES, IN_FEATURES), minval=-bound, maxval=bound, dtype=jnp.float32
    )
    bias = jax.random.uniform(
        kb, (OUT_FEATURES,), minval=-bound, maxval=bound, dtype=jnp.float32
    )

    def check(x, tile_n, name):
        out = jax.block_until_ready(my_module_forward(x, weight, bias, tile_n=tile_n))
        ref = _reference(x, weight, bias)
        assert out.shape == (x.shape[0], OUT_FEATURES), name
        assert jnp.allclose(out, ref, atol=1e-5, rtol=1e-5), f"mismatch vs reference ({name})"

    # Case 1: small batch -> single-block path (block dims == array dims).
    check(jax.random.normal(kx1, (8, IN_FEATURES), dtype=jnp.float32),
          DEFAULT_TILE_N, "small single-block")

    # Case 2: ragged batch, small tile -> grid of 3 with a masked boundary block.
    check(jax.random.normal(kx2, (300, IN_FEATURES), dtype=jnp.float32),
          128, "ragged multi-tile (masked boundary)")

    # Case 3: medium batch -> tile capped at n/2 so the grid has 2 parallel steps.
    check(jax.random.normal(kx3, (512, IN_FEATURES), dtype=jnp.float32),
          DEFAULT_TILE_N, "two-step megacore split")

    print("KERNEL_OK")
</pallas_src>

<mosaic_0001>
module attributes {stable_mosaic.version = 11 : i64} {
  func.func @_linear_logsoftmax_kernel(%arg0: i32, %arg1: memref<8x100xf32, #tpu.memory_space<vmem>>, %arg2: memref<2x100xf32, #tpu.memory_space<vmem>>, %arg3: memref<2xf32, #tpu.memory_space<smem>>, %arg4: memref<2x8xf32, #tpu.memory_space<vmem>>) attributes {dimension_semantics = [#tpu.dimension_semantics<parallel>], iteration_bounds = array<i64: 1>, scalar_prefetch = 0 : i64, scratch_operands = 0 : i64, tpu.core_type = #tpu.core_type<tc>, window_params = [{transform_indices = @transform_0, window_bounds = array<i64: 8, 100>}, {pipeline_mode = #tpu.pipeline_mode<synchronous>, transform_indices = @transform_1, window_bounds = array<i64: 2, 100>}, {transform_indices = @transform_2, window_bounds = array<i64: 2>}, {transform_indices = @transform_3, window_bounds = array<i64: 2, 8>}]} {
    %c0 = arith.constant 0 : index
    %c0_0 = arith.constant 0 : index
    %0 = vector.load %arg1[%c0, %c0_0] : memref<8x100xf32, #tpu.memory_space<vmem>>, vector<8x100xf32>
    %c0_1 = arith.constant 0 : index
    %c0_2 = arith.constant 0 : index
    %1 = vector.load %arg2[%c0_1, %c0_2] : memref<2x100xf32, #tpu.memory_space<vmem>>, vector<2x100xf32>
    %2 = vector.extract_strided_slice %1 {offsets = [1, 0], sizes = [1, 100], strides = [1, 1]} : vector<2x100xf32> to vector<1x100xf32>
    %3 = vector.extract_strided_slice %1 {offsets = [0, 0], sizes = [1, 100], strides = [1, 1]} : vector<2x100xf32> to vector<1x100xf32>
    %4 = arith.subf %2, %3 : vector<1x100xf32>
    %cst = arith.constant dense<0.000000e+00> : vector<1x8xf32>
    %5 = tpu.matmul %4, %0, %cst {dimension_numbers = #tpu.dot_dimension_numbers<[1], [1], [0], [0], [0, 0, 1, 0], [], []>} : vector<1x100xf32>, vector<8x100xf32>, vector<1x8xf32> -> vector<1x8xf32>
    %c1 = arith.constant 1 : index
    %6 = memref.load %arg3[%c1] : memref<2xf32, #tpu.memory_space<smem>>
    %c0_3 = arith.constant 0 : index
    %7 = memref.load %arg3[%c0_3] : memref<2xf32, #tpu.memory_space<smem>>
    %8 = arith.subf %6, %7 : f32
    %9 = vector.broadcast %8 : f32 to vector<1x8xf32>
    %10 = arith.addf %5, %9 : vector<1x8xf32>
    %cst_4 = arith.constant 0.000000e+00 : f32
    %11 = vector.broadcast %cst_4 : f32 to vector<1x8xf32>
    %12 = arith.maximumf %10, %11 : vector<1x8xf32>
    %13 = math.absf %10 : vector<1x8xf32>
    %cst_5 = arith.constant 0.000000e+00 : f32
    %14 = vector.broadcast %cst_5 : f32 to vector<1x8xf32>
    %15 = arith.subf %14, %13 : vector<1x8xf32>
    %16 = math.exp %15 : vector<1x8xf32>
    %cst_6 = arith.constant 1.000000e+00 : f32
    %17 = vector.broadcast %cst_6 : f32 to vector<1x8xf32>
    %18 = arith.addf %17, %16 : vector<1x8xf32>
    %19 = math.log %18 : vector<1x8xf32>
    %20 = arith.addf %12, %19 : vector<1x8xf32>
    %cst_7 = arith.constant 0.000000e+00 : f32
    %21 = vector.broadcast %cst_7 : f32 to vector<1x8xf32>
    %22 = arith.subf %21, %20 : vector<1x8xf32>
    %c0_8 = arith.constant 0 : index
    %c0_9 = arith.constant 0 : index
    %23 = vector.load %arg4[%c0_8, %c0_9] : memref<2x8xf32, #tpu.memory_space<vmem>>, vector<1x8xf32>
    tpu.vector_store %arg4[%c0_8, %c0_9], %22 {strides = array<i32>} : memref<2x8xf32, #tpu.memory_space<vmem>>, vector<1x8xf32>,
    %24 = arith.subf %10, %20 : vector<1x8xf32>
    %c1_10 = arith.constant 1 : index
    %c0_11 = arith.constant 0 : index
    %25 = vector.load %arg4[%c1_10, %c0_11] : memref<2x8xf32, #tpu.memory_space<vmem>>, vector<1x8xf32>
    tpu.vector_store %arg4[%c1_10, %c0_11], %24 {strides = array<i32>} : memref<2x8xf32, #tpu.memory_space<vmem>>, vector<1x8xf32>,
    return
  }
  func.func @transform_0(%arg0: i32) -> (i32, i32) {
    %c0_i32 = arith.constant 0 : i32
    %c0_i32_0 = arith.constant 0 : i32
    return %arg0, %c0_i32 : i32, i32
  }
  func.func @transform_1(%arg0: i32) -> (i32, i32) {
    %c0_i32 = arith.constant 0 : i32
    %c0_i32_0 = arith.constant 0 : i32
    %c0_i32_1 = arith.constant 0 : i32
    return %c0_i32, %c0_i32_0 : i32, i32
  }
  func.func @transform_2(%arg0: i32) -> i32 {
    %c0_i32 = arith.constant 0 : i32
    %c0_i32_0 = arith.constant 0 : i32
    return %c0_i32 : i32
  }
  func.func @transform_3(%arg0: i32) -> (i32, i32) {
    %c0_i32 = arith.constant 0 : i32
    %c0_i32_0 = arith.constant 0 : i32
    return %c0_i32, %arg0 : i32, i32
  }
}

</mosaic_0001>

<llo_original>
// kernel: my_module_forward.1
$region0: #{my_module_forward.1}
  #allocation0 [shape = 'u32[]', space=smem, size = 0x4, offset = 0x4, fixed_abs, tag = 'smem constant byte address 0x4 - core index']
  #allocation1 [shape = 'u32[144,128]{1,0:T(1,128)}', space=vmem, size = 0x12000, scoped, tag = 'internal scratch']
  %s0 = inlined_call_operand.hbm [shape: f32[8,100], index: 0, kind: input, shape index: {}]
  %s1 = inlined_call_operand.vmem [shape: f32[2,100], index: 1, kind: input, shape index: {}]
  %s2 = inlined_call_operand.vmem [shape: f32[2], index: 2, kind: input, shape index: {}]
  %s3 = inlined_call_operand.hbm [shape: f32[2,8], index: 3, kind: output, shape index: {}]
  %s4 = sld [smem:[#allocation0]]
  $region30: #{my_module_forward.1} parent=0
    _
  %s6 = ssub.s32 1, %s4
  %s7 = scalar_select 0, %s6, %s4
  $region1: #{my_module_forward.1} parent=0
    #allocation2 [shape = 'u8[4096]{0}', space=vmem, size = 0x1000, scoped, tag = 'input window, operand 0, single buffered']
    #allocation3 [shape = 's32[1]{0}', space=sflag, size = 0x4, scoped, tag = 'scoped memory for my_module_forward.1']
    #allocation4 [shape = 's32[1]{0}', space=sflag, size = 0x4, scoped, tag = 'scoped memory for my_module_forward.1']
    #allocation5 [shape = 's32[1]{0}', space=sflag, size = 0x4, scoped, tag = 'scoped memory for my_module_forward.1']
    #allocation6 [shape = 'u8[512]{0}', space=smem, size = 0x200, scoped, tag = 'input window, operand 2, single buffered']
    #allocation7 [shape = 'u8[1024]{0}', space=vmem, size = 0x400, scoped, tag = 'output window, operand 0, single buffered']
    %8 = vsyncpa [#allocation3], 0
    %9 = vsyncpa [#allocation5], 0
    %10 = vsyncpa [#allocation4], 0
    // Predicated region
    $region2: #{my_module_forward.1} parent=1 // pred_check
      _
    $region3: #{my_module_forward.1} parent=1 // pred_check_branch
      %12 = sbr.rel (0) target = $region5
    $region4: #{my_module_forward.1} parent=1 // pred_region
      %s14 = ssub.s32 128, 128
      %15 = vsyncadd [#allocation3], %s14
      %s17 = sshll.u32 [#allocation2], 4
      %s18 = int_to_ptr.vmem [resolvable:$true] %s17
      %20 = dma.hbm_to_vmem [thread:$0]  %s0, 128, %s18, [#allocation3]
    $region5: #{my_module_forward.1} parent=1 // pred_fallthru
      _
    // Predicated region
    $region6: #{my_module_forward.1} parent=1 // pred_check
      _
    $region7: #{my_module_forward.1} parent=1 // pred_check_branch
      %22 = sbr.rel (0) target = $region9
    $region8: #{my_module_forward.1} parent=1 // pred_region
      _
    $region9: #{my_module_forward.1} parent=1 // pred_fallthru
      _
    // Predicated region
    $region10: #{my_module_forward.1} parent=1 // pred_check
      _
    $region11: #{my_module_forward.1} parent=1 // pred_check_branch
      %24 = sbr.rel (0) target = $region13
    $region12: #{my_module_forward.1} parent=1 // pred_region
      %s26 = ssub.s32 16, 16
      %27 = vsyncadd [#allocation5], %s26
      %s29 = sshll.u32 %s2, 4
      %s30 = int_to_ptr.vmem [resolvable:$true] %s29
      %32 = dma.vmem_to_smem %s30, 16, [#allocation6], [#allocation5]
    $region13: #{my_module_forward.1} parent=1 // pred_fallthru
      _
    // Predicated region
    $region14: #{my_module_forward.1} parent=1 // pred_check
      _
    $region15: #{my_module_forward.1} parent=1 // pred_check_branch
      %34 = sbr.rel (0) target = $region17
    $region16: #{my_module_forward.1} parent=1 // pred_region
      %35 = dma.done [#allocation3], 128
    $region17: #{my_module_forward.1} parent=1 // pred_fallthru
      _
    // Predicated region
    $region18: #{my_module_forward.1} parent=1 // pred_check
      _
    $region19: #{my_module_forward.1} parent=1 // pred_check_branch
      %37 = sbr.rel (0) target = $region21
    $region20: #{my_module_forward.1} parent=1 // pred_region
      %38 = dma.done [#allocation5], 16
    $region21: #{my_module_forward.1} parent=1 // pred_fallthru
      _
    %39 = sfence
    %v40 = vld [vmem:[#allocation2] sm:$0xff]
    %v41 = vld [vmem:[%s1] sm:$0x3]
    %v43 = vrot.slane %v41, 7
    %v45 = vsub.f32 %v41, %v43
    %s46 = sld [smem:[#allocation6 + $0x1]]
    %s47 = sld [smem:[#allocation6]]
    %s48 = ssub.f32 %s46, %s47
    %v49 = vstv %s48
    %v51 = vrot.slane %v45, 1
    %vm52 = vcmask 818176
    %v53 = vsel %vm52, %v51, 0
    %v56 = vsel %vm52, %v40, 0
    %58 = vmatprep.subr.mxu0 0.0
    %59 = vmatpush1.xpose.msra.mxu0 %v56
    %60 = vmatprep.subr.mxu0 0.0
    %61 = vmatpush1.xpose.msra.mxu0 0.0
    %62 = vmatprep.subr.mxu0 0.0
    %63 = vmatpush1.xpose.msra.mxu0 0.0
    %64 = vmatprep.subr.mxu0 0.0
    %65 = vmatpush1.xpose.msra.mxu0 0.0
    %66 = vmatprep.subr.mxu0 0.0
    %67 = vmatpush1.xpose.msra.mxu0 0.0
    %68 = vmatprep.subr.mxu0 0.0
    %69 = vmatpush1.xpose.msra.mxu0 0.0
    %70 = vmatprep.subr.mxu0 0.0
    %71 = vmatpush1.xpose.msra.mxu0 0.0
    %72 = vmatprep.subr.mxu0 0.0
    %73 = vmatpush1.xpose.msra.mxu0 0.0
    %74 = vmatprep.subr.mxu0 0.0
    %75 = vmatpush1.xpose.msra.mxu0 0.0
    %76 = vmatprep.subr.mxu0 0.0
    %77 = vmatpush1.xpose.msra.mxu0 0.0
    %78 = vmatprep.subr.mxu0 0.0
    %79 = vmatpush1.xpose.msra.mxu0 0.0
    %80 = vmatprep.subr.mxu0 0.0
    %81 = vmatpush1.xpose.msra.mxu0 0.0
    %82 = vmatprep.subr.mxu0 0.0
    %83 = vmatpush1.xpose.msra.mxu0 0.0
    %84 = vmatprep.subr.mxu0 0.0
    %85 = vmatpush1.xpose.msra.mxu0 0.0
    %86 = vmatprep.subr.mxu0 0.0
    %87 = vmatpush1.xpose.msra.mxu0 0.0
    %88 = vmatprep.subr.mxu0 0.0
    %89 = vmatpush1.xpose.msra.mxu0 0.0
    %90 = vmatprep.subr.mxu0 0.0
    %91 = vmatpush1.xpose.msra.mxu0 0.0
    %92 = vmatprep.subr.mxu0 0.0
    %93 = vmatpush1.xpose.msra.mxu0 0.0
    %94 = vmatprep.subr.mxu0 0.0
    %95 = vmatpush1.xpose.msra.mxu0 0.0
    %96 = vmatprep.subr.mxu0 0.0
    %97 = vmatpush1.xpose.msra.mxu0 0.0
    %98 = vmatprep.subr.mxu0 0.0
    %99 = vmatpush1.xpose.msra.mxu0 0.0
    %100 = vmatprep.subr.mxu0 0.0
    %101 = vmatpush1.xpose.msra.mxu0 0.0
    %102 = vmatprep.subr.mxu0 0.0
    %103 = vmatpush1.xpose.msra.mxu0 0.0
    %104 = vmatprep.subr.mxu0 0.0
    %105 = vmatpush1.xpose.msra.mxu0 0.0
    %106 = vmatprep.subr.mxu0 0.0
    %107 = vmatpush1.xpose.msra.mxu0 0.0
    %108 = vmatprep.subr.mxu0 0.0
    %109 = vmatpush1.xpose.msra.mxu0 0.0
    %110 = vmatprep.subr.mxu0 0.0
    %111 = vmatpush1.xpose.msra.mxu0 0.0
    %112 = vmatprep.subr.mxu0 0.0
    %113 = vmatpush1.xpose.msra.mxu0 0.0
    %114 = vmatprep.subr.mxu0 0.0
    %115 = vmatpush1.xpose.msra.mxu0 0.0
    %116 = vmatprep.subr.mxu0 0.0
    %117 = vmatpush1.xpose.msra.mxu0 0.0
    %118 = vmatprep.subr.mxu0 0.0
    %119 = vmatpush1.xpose.msra.mxu0 0.0
    %120 = vmatprep.subr.mxu0 0.0
    %121 = vmatpush1.xpose.msra.mxu0 0.0
    %122 = vmatprep.mubr.f32.mxu0 0.0
    %123 = vmatmul.mubr.f32.gmra.mrb[0].mxu0 %v53
    %v124 = vpop.f32.mrb[0].mxu0
    %v125 = vadd.f32 %v49, %v124
    %v126 = vpop.f32.mrb[0].mxu0
    %127 = vdwg.mxu0
    %v128 = vmax.f32 %v125, 0.0
    %v129 = vand.u32 2147483647, %v125
    %v130 = vsub.f32 0.0, %v129
    %v131 = vmul.f32 %v130, 1.442695
    %v132 = vpow.pop %v131
    %v133 = vadd.f32 %v132, 1.0
    %v134 = vlog2.pop %v133
    %v135 = vmul.f32 %v134, 0.6931472
    %v136 = vadd.f32 %v128, %v135
    %v137 = vsub.f32 0.0, %v136
    %vm138 = vcmask 57344
    %139 = vst.msk [vmem:[#allocation7] sm:$0x1] %vm138, %v137
    %v140 = vsub.f32 %v125, %v136
    %141 = vst.msk [vmem:[#allocation7 + $0x1] sm:$0x1] %vm138, %v140
    // Predicated region
    $region22: #{my_module_forward.1} parent=1 // pred_check
      _
    $region23: #{my_module_forward.1} parent=1 // pred_check_branch
      %143 = sbr.rel (0) target = $region25
    $region24: #{my_module_forward.1} parent=1 // pred_region
      %s145 = ssub.s32 32, 32
      %146 = vsyncadd [#allocation4], %s145
      %s148 = sshll.u32 [#allocation7], 4
      %s149 = int_to_ptr.vmem [resolvable:$true] %s148
      %151 = dma.vmem_to_hbm [thread:$0]  %s149, 32, %s3, [#allocation4]
    $region25: #{my_module_forward.1} parent=1 // pred_fallthru
      _
    // Predicated region
    $region26: #{my_module_forward.1} parent=1 // pred_check
      _
    $region27: #{my_module_forward.1} parent=1 // pred_check_branch
      %153 = sbr.rel (0) target = $region29
    $region28: #{my_module_forward.1} parent=1 // pred_region
      %154 = dma.done [#allocation4], 32
    $region29: #{my_module_forward.1} parent=1 // pred_fallthru
      _
    %155 = vsyncpa [#allocation3], 1
    %156 = vsyncpa [#allocation4], 1
    %157 = vsyncpa [#allocation5], 1

</llo_original>
